<compile_context>
chip_gen: v7x
topology: tpu7x:2x2x1
jax: 0.10.0
libtpu: 0.0.40
codegen_flags: <defaults>
</compile_context>

<pallas_src>
import math

import jax
import jax.numpy as jnp
from jax.experimental import pallas as pl
from jax.experimental.pallas import tpu as pltpu


def _aux_encoder_kernel(t_ref, w1s_ref, w1c_ref, b1_ref, w2t_ref, b2_ref, o_ref):
    # t_ref   : (1, TL)   time values (lane-dense)
    # w1s_ref : (H, 1)    layer-1 weights for the sin feature
    # w1c_ref : (H, 1)    layer-1 weights for the cos feature
    # b1_ref  : (H, 1)
    # w2t_ref : (C, H)    layer-2 weight, transposed
    # b2_ref  : (C, 1)
    # o_ref   : (C, TL)   lane-dense output tile
    t = t_ref[...]
    t_scaled = (t - 50.0) * (math.pi / 50.0)          # (1, TL)
    s = jnp.sin(t_scaled)                             # (1, TL)  lane-dense EUP
    c = jnp.cos(t_scaled)                             # (1, TL)

    # Linear(2, H) as broadcast FMAs on the VPU: (H,1)*(1,TL) -> (H,TL).
    h = w1s_ref[...] * s + w1c_ref[...] * c + b1_ref[...]
    h = jnp.maximum(h, 0.0)                           # ReLU

    # Linear(H, C) on the MXU with f32 accumulate; result is lane-dense in TL.
    out = jnp.dot(w2t_ref[...], h, preferred_element_type=jnp.float32) + b2_ref[...]
    o_ref[...] = out.astype(o_ref.dtype)


def _round_up(x, m):
    return ((x + m - 1) // m) * m


def aux_encoder_forward(t_batch, params, *, tile_cols=16384, out_dtype=jnp.float32):
    """t_batch: (..., 1) float -> (..., cond_dims) out_dtype."""
    assert t_batch.shape[-1] == 1
    w1, b1, w2, b2 = params  # w1:(2,H) b1:(1,H) w2:(H,C) b2:(1,C)
    hidden = w1.shape[1]
    cond_dims = w2.shape[1]

    lead_shape = t_batch.shape[:-1]
    n = 1
    for d in lead_shape:
        n *= d
    n = max(n, 1)

    # Feature-major parameter views (tiny, one-time).
    w1s = w1[0].reshape(hidden, 1)
    w1c = w1[1].reshape(hidden, 1)
    b1t = b1.reshape(hidden, 1)
    w2t = w2.T                             # (C, H)
    b2t = b2.reshape(cond_dims, 1)

    # Tile selection: lane axis multiple of 128; clamp so the grid has >=2
    # steps when possible (v7x dual-TC sharding); cap at tile_cols for VMEM.
    tl = min(tile_cols, _round_up(-(-n // 2), 128))
    tl = max(128, _round_up(tl, 128))
    n_pad = _round_up(n, tl)
    grid = (n_pad // tl,)

    t_flat = t_batch.reshape(n).astype(jnp.float32)
    if n_pad != n:
        t_flat = jnp.pad(t_flat, (0, n_pad - n))
    t_flat = t_flat.reshape(1, n_pad)

    out_bytes = jnp.dtype(out_dtype).itemsize
    cost = pl.CostEstimate(
        flops=n_pad * (4 * hidden + 2 * hidden * cond_dims),
        transcendentals=2 * n_pad,
        bytes_accessed=(
            n_pad * 4                                   # t in
            + n_pad * cond_dims * out_bytes             # out
            + 4 * (3 * hidden + hidden * cond_dims + cond_dims)  # params
        ),
    )

    out_t = pl.pallas_call(
        _aux_encoder_kernel,
        out_shape=jax.ShapeDtypeStruct((cond_dims, n_pad), out_dtype),
        grid=grid,
        in_specs=[
            pl.BlockSpec((1, tl), lambda i: (0, i)),              # t tile (lane-dense)
            pl.BlockSpec((hidden, 1), lambda i: (0, 0)),          # w1 sin col (resident)
            pl.BlockSpec((hidden, 1), lambda i: (0, 0)),          # w1 cos col (resident)
            pl.BlockSpec((hidden, 1), lambda i: (0, 0)),          # b1 (resident)
            pl.BlockSpec((cond_dims, hidden), lambda i: (0, 0)),  # w2^T (resident)
            pl.BlockSpec((cond_dims, 1), lambda i: (0, 0)),       # b2 (resident)
        ],
        out_specs=pl.BlockSpec((cond_dims, tl), lambda i: (0, i)),
        compiler_params=pltpu.CompilerParams(
            dimension_semantics=("parallel",),
            vmem_limit_bytes=32 * 1024 * 1024,
        ),
        cost_estimate=cost,
    )(t_flat, w1s, w1c, b1t, w2t, b2t)

    # (C, n) -> (..., C).  Transpose back to row-major happens once in XLA;
    # the kernel itself does only lane-dense, unmasked stores.
    out = out_t[:, :n].T
    return out.reshape(lead_shape + (cond_dims,))


def init_params(key, cond_dims=16):
    """Deterministic synthetic init matching nn.Linear(2,50) / nn.Linear(50,cond_dims)."""
    k1, k2, k3, k4 = jax.random.split(key, 4)
    # PyTorch Linear stores weight as (out, in); we keep (in, out) here.
    bound1 = 1.0 / math.sqrt(2.0)
    w1 = jax.random.uniform(k1, (2, 50), jnp.float32, -bound1, bound1)
    b1 = jax.random.uniform(k2, (1, 50), jnp.float32, -bound1, bound1)
    bound2 = 1.0 / math.sqrt(50.0)
    w2 = jax.random.uniform(k3, (50, cond_dims), jnp.float32, -bound2, bound2)
    b2 = jax.random.uniform(k4, (1, cond_dims), jnp.float32, -bound2, bound2)
    return (w1, b1, w2, b2)


def reference_forward(t_batch, params):
    """Pure-JAX reference for correctness checking."""
    w1, b1, w2, b2 = params
    t_scaled = (t_batch - 50.0) / 50.0 * math.pi
    c = jnp.concatenate([jnp.sin(t_scaled), jnp.cos(t_scaled)], axis=-1)
    h = jnp.maximum(c @ w1 + b1[0], 0.0)
    return h @ w2 + b2[0]


if __name__ == "__main__":
    key = jax.random.PRNGKey(0)
    k_param, k_t1, k_t2, k_t3 = jax.random.split(key, 4)

    cond_dims = 16
    params = init_params(k_param, cond_dims=cond_dims)

    # Small input consistent with the module: (batch=2, seq=8, 1) time indices.
    t_small = jax.random.uniform(k_t1, (2, 8, 1), jnp.float32, 0.0, 100.0)
    out_small = jax.block_until_ready(aux_encoder_forward(t_small, params))
    ref_small = reference_forward(t_small, params)
    assert out_small.shape == (2, 8, cond_dims), out_small.shape
    assert jnp.allclose(out_small, ref_small, atol=2e-5, rtol=2e-5), (
        float(jnp.max(jnp.abs(out_small - ref_small)))
    )

    # Larger input: exercises the >=2-step grid clamp and the padding/tail path.
    t_mid = jax.random.uniform(k_t2, (3, 1000, 1), jnp.float32, 0.0, 100.0)
    out_mid = jax.block_until_ready(aux_encoder_forward(t_mid, params))
    ref_mid = reference_forward(t_mid, params)
    assert out_mid.shape == (3, 1000, cond_dims), out_mid.shape
    assert jnp.allclose(out_mid, ref_mid, atol=2e-5, rtol=2e-5), (
        float(jnp.max(jnp.abs(out_mid - ref_mid)))
    )

    # Exercises the full default tile (TL=16384) with a multi-step grid.
    t_big = jax.random.uniform(k_t3, (2, 20000, 1), jnp.float32, 0.0, 100.0)
    out_big = jax.block_until_ready(aux_encoder_forward(t_big, params))
    ref_big = reference_forward(t_big, params)
    assert out_big.shape == (2, 20000, cond_dims), out_big.shape
    assert jnp.allclose(out_big, ref_big, atol=2e-5, rtol=2e-5), (
        float(jnp.max(jnp.abs(out_big - ref_big)))
    )

    print("KERNEL_OK")
</pallas_src>

<mosaic_0001>
module attributes {stable_mosaic.version = 11 : i64} {
  func.func @_aux_encoder_kernel(%arg0: i32, %arg1: memref<1x128xf32, #tpu.memory_space<vmem>>, %arg2: memref<50x1xf32, #tpu.memory_space<vmem>>, %arg3: memref<50x1xf32, #tpu.memory_space<vmem>>, %arg4: memref<50x1xf32, #tpu.memory_space<vmem>>, %arg5: memref<16x50xf32, #tpu.memory_space<vmem>>, %arg6: memref<16x1xf32, #tpu.memory_space<vmem>>, %arg7: memref<16x128xf32, #tpu.memory_space<vmem>>) attributes {dimension_semantics = [#tpu.dimension_semantics<parallel>], iteration_bounds = array<i64: 1>, scalar_prefetch = 0 : i64, scratch_operands = 0 : i64, tpu.core_type = #tpu.core_type<tc>, window_params = [{transform_indices = @transform_0, window_bounds = array<i64: 1, 128>}, {pipeline_mode = #tpu.pipeline_mode<synchronous>, transform_indices = @transform_1, window_bounds = array<i64: 50, 1>}, {pipeline_mode = #tpu.pipeline_mode<synchronous>, transform_indices = @transform_2, window_bounds = array<i64: 50, 1>}, {pipeline_mode = #tpu.pipeline_mode<synchronous>, transform_indices = @transform_3, window_bounds = array<i64: 50, 1>}, {pipeline_mode = #tpu.pipeline_mode<synchronous>, transform_indices = @transform_4, window_bounds = array<i64: 16, 50>}, {pipeline_mode = #tpu.pipeline_mode<synchronous>, transform_indices = @transform_5, window_bounds = array<i64: 16, 1>}, {transform_indices = @transform_6, window_bounds = array<i64: 16, 128>}]} {
    %c0 = arith.constant 0 : index
    %c0_0 = arith.constant 0 : index
    %0 = vector.load %arg1[%c0, %c0_0] : memref<1x128xf32, #tpu.memory_space<vmem>>, vector<1x128xf32>
    %cst = arith.constant 5.000000e+01 : f32
    %1 = vector.broadcast %cst : f32 to vector<1x128xf32>
    %2 = arith.subf %0, %1 : vector<1x128xf32>
    %cst_1 = arith.constant 0.0628318563 : f32
    %3 = vector.broadcast %cst_1 : f32 to vector<1x128xf32>
    %4 = arith.mulf %2, %3 : vector<1x128xf32>
    %5 = math.sin %4 : vector<1x128xf32>
    %6 = math.cos %4 : vector<1x128xf32>
    %c0_2 = arith.constant 0 : index
    %c0_3 = arith.constant 0 : index
    %7 = vector.load %arg2[%c0_2, %c0_3] : memref<50x1xf32, #tpu.memory_space<vmem>>, vector<50x1xf32>
    %8 = vector.broadcast %7 : vector<50x1xf32> to vector<50x128xf32>
    %9 = vector.broadcast %5 : vector<1x128xf32> to vector<50x128xf32>
    %10 = arith.mulf %8, %9 : vector<50x128xf32>
    %c0_4 = arith.constant 0 : index
    %c0_5 = arith.constant 0 : index
    %11 = vector.load %arg3[%c0_4, %c0_5] : memref<50x1xf32, #tpu.memory_space<vmem>>, vector<50x1xf32>
    %12 = vector.broadcast %11 : vector<50x1xf32> to vector<50x128xf32>
    %13 = vector.broadcast %6 : vector<1x128xf32> to vector<50x128xf32>
    %14 = arith.mulf %12, %13 : vector<50x128xf32>
    %15 = arith.addf %10, %14 : vector<50x128xf32>
    %c0_6 = arith.constant 0 : index
    %c0_7 = arith.constant 0 : index
    %16 = vector.load %arg4[%c0_6, %c0_7] : memref<50x1xf32, #tpu.memory_space<vmem>>, vector<50x1xf32>
    %17 = vector.broadcast %16 : vector<50x1xf32> to vector<50x128xf32>
    %18 = arith.addf %15, %17 : vector<50x128xf32>
    %cst_8 = arith.constant 0.000000e+00 : f32
    %19 = vector.broadcast %cst_8 : f32 to vector<50x128xf32>
    %20 = arith.maximumf %18, %19 : vector<50x128xf32>
    %c0_9 = arith.constant 0 : index
    %c0_10 = arith.constant 0 : index
    %21 = vector.load %arg5[%c0_9, %c0_10] : memref<16x50xf32, #tpu.memory_space<vmem>>, vector<16x50xf32>
    %cst_11 = arith.constant dense<0.000000e+00> : vector<16x128xf32>
    %22 = tpu.matmul %21, %20, %cst_11 {dimension_numbers = #tpu.dot_dimension_numbers<[1], [0], [0], [1], [0, 0, 1, 1], [], []>} : vector<16x50xf32>, vector<50x128xf32>, vector<16x128xf32> -> vector<16x128xf32>
    %c0_12 = arith.constant 0 : index
    %c0_13 = arith.constant 0 : index
    %23 = vector.load %arg6[%c0_12, %c0_13] : memref<16x1xf32, #tpu.memory_space<vmem>>, vector<16x1xf32>
    %24 = vector.broadcast %23 : vector<16x1xf32> to vector<16x128xf32>
    %25 = arith.addf %22, %24 : vector<16x128xf32>
    %c0_14 = arith.constant 0 : index
    %c0_15 = arith.constant 0 : index
    %26 = vector.load %arg7[%c0_14, %c0_15] : memref<16x128xf32, #tpu.memory_space<vmem>>, vector<16x128xf32>
    tpu.vector_store %arg7[%c0_14, %c0_15], %25 {strides = array<i32>} : memref<16x128xf32, #tpu.memory_space<vmem>>, vector<16x128xf32>,
    return
  }
  func.func @transform_0(%arg0: i32) -> (i32, i32) {
    %c0_i32 = arith.constant 0 : i32
    %c0_i32_0 = arith.constant 0 : i32
    return %c0_i32, %arg0 : i32, i32
  }
  func.func @transform_1(%arg0: i32) -> (i32, i32) {
    %c0_i32 = arith.constant 0 : i32
    %c0_i32_0 = arith.constant 0 : i32
    %c0_i32_1 = arith.constant 0 : i32
    return %c0_i32, %c0_i32_0 : i32, i32
  }
  func.func @transform_2(%arg0: i32) -> (i32, i32) {
    %c0_i32 = arith.constant 0 : i32
    %c0_i32_0 = arith.constant 0 : i32
    %c0_i32_1 = arith.constant 0 : i32
    return %c0_i32, %c0_i32_0 : i32, i32
  }
  func.func @transform_3(%arg0: i32) -> (i32, i32) {
    %c0_i32 = arith.constant 0 : i32
    %c0_i32_0 = arith.constant 0 : i32
    %c0_i32_1 = arith.constant 0 : i32
    return %c0_i32, %c0_i32_0 : i32, i32
  }
  func.func @transform_4(%arg0: i32) -> (i32, i32) {
    %c0_i32 = arith.constant 0 : i32
    %c0_i32_0 = arith.constant 0 : i32
    %c0_i32_1 = arith.constant 0 : i32
    return %c0_i32, %c0_i32_0 : i32, i32
  }
  func.func @transform_5(%arg0: i32) -> (i32, i32) {
    %c0_i32 = arith.constant 0 : i32
    %c0_i32_0 = arith.constant 0 : i32
    %c0_i32_1 = arith.constant 0 : i32
    return %c0_i32, %c0_i32_0 : i32, i32
  }
  func.func @transform_6(%arg0: i32) -> (i32, i32) {
    %c0_i32 = arith.constant 0 : i32
    %c0_i32_0 = arith.constant 0 : i32
    return %c0_i32, %arg0 : i32, i32
  }
}

</mosaic_0001>

<llo_original>
// kernel: tpu_custom_call.1
$region0: #{tpu_custom_call.1}
  #allocation0 [shape = 'u32[]', space=smem, size = 0x4, offset = 0x4, fixed_abs, tag = 'smem constant byte address 0x4 - core index']
  #allocation1 [shape = 'u32[144,128]{1,0:T(1,128)}', space=vmem, size = 0x12000, scoped, tag = 'internal scratch']
  %s0 = inlined_call_operand.vmem [shape: f32[1,128], index: 0, kind: input, shape index: {}]
  %s1 = inlined_call_operand.vmem [shape: f32[50,1], index: 1, kind: input, shape index: {}]
  %s2 = inlined_call_operand.vmem [shape: f32[50,1], index: 2, kind: input, shape index: {}]
  %s3 = inlined_call_operand.vmem [shape: f32[50,1], index: 3, kind: input, shape index: {}]
  %s4 = inlined_call_operand.vmem [shape: f32[16,50], index: 4, kind: input, shape index: {}]
  %s5 = inlined_call_operand.vmem [shape: f32[16,1], index: 5, kind: input, shape index: {}]
  %s6 = inlined_call_operand.hbm [shape: f32[16,128], index: 6, kind: output, shape index: {}]
  %s7 = sld [smem:[#allocation0]]
  $region34: #{tpu_custom_call.1} parent=0
    _
  %s9 = ssub.s32 1, %s7
  %s10 = scalar_select 0, %s9, %s7
  $region1: #{tpu_custom_call.1} parent=0
    #allocation2 [shape = 'u8[8192]{0}', space=vmem, size = 0x2000, scoped, tag = 'output window, operand 0, single buffered']
    #allocation3 [shape = 's32[1]{0}', space=sflag, size = 0x4, scoped, tag = 'scoped memory for tpu_custom_call.1']
    %11 = vsyncpa [#allocation3], 0
    // Predicated region
    $region2: #{tpu_custom_call.1} parent=1 // pred_check
      _
    $region3: #{tpu_custom_call.1} parent=1 // pred_check_branch
      %13 = sbr.rel (0) target = $region5
    $region4: #{tpu_custom_call.1} parent=1 // pred_region
      _
    $region5: #{tpu_custom_call.1} parent=1 // pred_fallthru
      _
    // Predicated region
    $region6: #{tpu_custom_call.1} parent=1 // pred_check
      _
    $region7: #{tpu_custom_call.1} parent=1 // pred_check_branch
      %15 = sbr.rel (0) target = $region9
    $region8: #{tpu_custom_call.1} parent=1 // pred_region
      _
    $region9: #{tpu_custom_call.1} parent=1 // pred_fallthru
      _
    // Predicated region
    $region10: #{tpu_custom_call.1} parent=1 // pred_check
      _
    $region11: #{tpu_custom_call.1} parent=1 // pred_check_branch
      %17 = sbr.rel (0) target = $region13
    $region12: #{tpu_custom_call.1} parent=1 // pred_region
      _
    $region13: #{tpu_custom_call.1} parent=1 // pred_fallthru
      _
    // Predicated region
    $region14: #{tpu_custom_call.1} parent=1 // pred_check
      _
    $region15: #{tpu_custom_call.1} parent=1 // pred_check_branch
      %19 = sbr.rel (0) target = $region17
    $region16: #{tpu_custom_call.1} parent=1 // pred_region
      _
    $region17: #{tpu_custom_call.1} parent=1 // pred_fallthru
      _
    // Predicated region
    $region18: #{tpu_custom_call.1} parent=1 // pred_check
      _
    $region19: #{tpu_custom_call.1} parent=1 // pred_check_branch
      %21 = sbr.rel (0) target = $region21
    $region20: #{tpu_custom_call.1} parent=1 // pred_region
      _
    $region21: #{tpu_custom_call.1} parent=1 // pred_fallthru
      _
    // Predicated region
    $region22: #{tpu_custom_call.1} parent=1 // pred_check
      _
    $region23: #{tpu_custom_call.1} parent=1 // pred_check_branch
      %23 = sbr.rel (0) target = $region25
    $region24: #{tpu_custom_call.1} parent=1 // pred_region
      _
    $region25: #{tpu_custom_call.1} parent=1 // pred_fallthru
      _
    %v24 = vld [vmem:[%s0] sm:$0x1]
    %v25 = vsub.f32 %v24, 50.0
    %v26 = vmul.f32 %v25, 0.06283186
    %v27 = vand.u32 2147483647, %v26
    %vm28 = vcmp.le.f32.partialorder %v27, 0.7853982
    %vm29 = vcmp.lt.s32.totalorder %v26, 0
    %v30 = vand.u32 %v26, 2139095040
    %v31 = vshrl.u32 %v30, 23
    %v32 = vsub.s32 %v31, 127
    %v33 = vand.u32 2147483647, %v26
    %v34 = vand.u32 %v33, 8388607
    %v35 = vor.u32 %v34, 8388608
    %v36 = vsub.s32 0, %v35
    %v37 = vadd.s32 %v32, 1
    %vm38 = vcmp.gt.s32.totalorder %v37, 0
    %v39 = vsel %vm38, %v37, 0
    %v40 = vshrl.u32 %v39, 5
    %v41 = vand.u32 %v39, 31
    %v42 = vsub.s32 32, %v41
    %v43 = vshrl.u32 683565275, %v42
    %v44 = vshll.u32 683565275, %v41
    %v45 = vshrl.u32 2475754826, %v42
    %v46 = vor.u32 %v44, %v45
    %v47 = vshll.u32 2475754826, %v41
    %v48 = vshrl.u32 2131351028, %v42
    %v49 = vor.u32 %v47, %v48
    %v50 = vshll.u32 2131351028, %v41
    %v51 = vshrl.u32 2102212464, %v42
    %v52 = vor.u32 %v50, %v51
    %v53 = vshll.u32 2102212464, %v41
    %v54 = vshrl.u32 920167782, %v42
    %v55 = vor.u32 %v53, %v54
    %v56 = vshll.u32 920167782, %v41
    %v57 = vshrl.u32 1326507024, %v42
    %v58 = vor.u32 %v56, %v57
    %vm59 = vcmp.lt.s32.totalorder %v40, 1
    %vm60 = vcmp.lt.s32.totalorder %v40, 2
    %vm61 = vcmp.lt.s32.totalorder %v40, 3
    %vm62 = vcmp.lt.s32.totalorder %v40, 4
    %v63 = vsel %vm59, %v43, %v46
    %v64 = vsel %vm62, %v52, 2102212464
    %v65 = vsel %vm61, %v49, %v64
    %v66 = vsel %vm60, %v63, %v65
    %v67 = vsel %vm59, %v46, %v49
    %v68 = vsel %vm62, %v55, 920167782
    %v69 = vsel %vm61, %v52, %v68
    %v70 = vsel %vm60, %v67, %v69
    %v71 = vsel %vm59, %v49, %v52
    %v72 = vsel %vm62, %v58, 1326507024
    %v73 = vsel %vm61, %v55, %v72
    %v74 = vsel %vm60, %v71, %v73
    %v75 = vshll.u32 %v35, 8
    %v76 = vmul.u32.u64.compose %v75, %v74
    %v77 = vextract.low.u32 %v76
    %v78 = vextract.high.u32 %v76
    %v79 = vmul.u32.u64.compose %v75, %v70
    %v80 = vextract.low.u32 %v79
    %v81 = vextract.high.u32 %v79
    %v82 = vmul.u32 %v75, %v66
    %v83 = vadd.s32 %v78, %v80
    %vm84 = vc.u32 %v78, %v80
    %v85 = vadd.s32 %v81, 1
    %v86 = vsel %vm84, %v85, %v81
    %v87 = vadd.s32 %v82, %v86
    %v88 = vadd.s32 %v87, 536870912
    %v89 = vshrl.u32 %v88, 30
    %v90 = vshll.u32 %v89, 30
    %v91 = vsub.s32 %v87, %v90
    %vm92 = vcmp.lt.s32.totalorder %v91, 0
    %v93 = vsub.s32 0, %v91
    %v94 = vsel %vm92, %v93, %v91
    %v95 = vclz %v94
    %v96 = vsub.s32 %v95, 2
    %vm97 = vcmp.gt.s32.totalorder 0, %v96
    %v98 = vsel %vm97, 0, %v96
    %v99 = vsub.s32 32, %v98
    %v100 = vshll.u32 %v91, %v98
    %v101 = vshrl.u32 %v83, %v99
    %v102 = vor.u32 %v100, %v101
    %v103 = vsub.s32 4294967266, %v98
    %v104 = vadd.s32 %v103, 127
    %v105 = vshll.u32 %v104, 23
    %v106 = vor.u32 4788187, %v105
    %v107 = vand.u32 2147483647, %v106
    %v109 = vcvt.s32.f32 %v102
    %v110 = vmul.f32 %v109, %v107
    %v111 = vxor.u32 %v110, 2147483648
    %v112 = vsel %vm29, %v111, %v110
    %v113 = vsub.s32 4, %v89
    %v114 = vsel %vm29, %v113, %v89
    %v115 = vsel %vm28, %v26, %v112
    %v116 = vsel %vm28, 0, %v114
    %v117 = vcosq.f32.pop %v115
    %v118 = vsinq.f32.pop %v115
    %vm119 = vweird.f32 %v26
    %v120 = vadd.s32 %v116, 3
    %v121 = vand.u32 %v120, 3
    %vm122 = vcmp.lt.s32.totalorder %v121, 2
    %vm123 = vcmp.eq.s32.totalorder %v121, 0
    %v124 = vxor.u32 %v118, 2147483648
    %v125 = vsel %vm123, %v117, %v124
    %vm126 = vcmp.eq.s32.totalorder %v121, 2
    %v127 = vxor.u32 %v117, 2147483648
    %v128 = vsel %vm126, %v127, %v118
    %v129 = vsel %vm122, %v125, %v128
    %v130 = vsel %vm119, nan, %v129
    %v131 = vand.u32 2147483647, %v26
    %vm132 = vcmp.le.f32.partialorder %v131, 0.7853982
    %vm133 = vcmp.lt.s32.totalorder %v26, 0
    %v134 = vand.u32 %v26, 2139095040
    %v135 = vshrl.u32 %v134, 23
    %v136 = vsub.s32 %v135, 127
    %v137 = vand.u32 2147483647, %v26
    %v138 = vand.u32 %v137, 8388607
    %v139 = vor.u32 %v138, 8388608
    %v140 = vsub.s32 0, %v139
    %v141 = vadd.s32 %v136, 1
    %vm142 = vcmp.gt.s32.totalorder %v141, 0
    %v143 = vsel %vm142, %v141, 0
    %v144 = vshrl.u32 %v143, 5
    %v145 = vand.u32 %v143, 31
    %v146 = vsub.s32 32, %v145
    %v147 = vshrl.u32 683565275, %v146
    %v148 = vshll.u32 683565275, %v145
    %v149 = vshrl.u32 2475754826, %v146
    %v150 = vor.u32 %v148, %v149
    %v151 = vshll.u32 2475754826, %v145
    %v152 = vshrl.u32 2131351028, %v146
    %v153 = vor.u32 %v151, %v152
    %v154 = vshll.u32 2131351028, %v145
    %v155 = vshrl.u32 2102212464, %v146
    %v156 = vor.u32 %v154, %v155
    %v157 = vshll.u32 2102212464, %v145
    %v158 = vshrl.u32 920167782, %v146
    %v159 = vor.u32 %v157, %v158
    %v160 = vshll.u32 920167782, %v145
    %v161 = vshrl.u32 1326507024, %v146
    %v162 = vor.u32 %v160, %v161
    %vm163 = vcmp.lt.s32.totalorder %v144, 1
    %vm164 = vcmp.lt.s32.totalorder %v144, 2
    %vm165 = vcmp.lt.s32.totalorder %v144, 3
    %vm166 = vcmp.lt.s32.totalorder %v144, 4
    %v167 = vsel %vm163, %v147, %v150
    %v168 = vsel %vm166, %v156, 2102212464
    %v169 = vsel %vm165, %v153, %v168
    %v170 = vsel %vm164, %v167, %v169
    %v171 = vsel %vm163, %v150, %v153
    %v172 = vsel %vm166, %v159, 920167782
    %v173 = vsel %vm165, %v156, %v172
    %v174 = vsel %vm164, %v171, %v173
    %v175 = vsel %vm163, %v153, %v156
    %v176 = vsel %vm166, %v162, 1326507024
    %v177 = vsel %vm165, %v159, %v176
    %v178 = vsel %vm164, %v175, %v177
    %v179 = vshll.u32 %v139, 8
    %v180 = vmul.u32.u64.compose %v179, %v178
    %v181 = vextract.low.u32 %v180
    %v182 = vextract.high.u32 %v180
    %v183 = vmul.u32.u64.compose %v179, %v174
    %v184 = vextract.low.u32 %v183
    %v185 = vextract.high.u32 %v183
    %v186 = vmul.u32 %v179, %v170
    %v187 = vadd.s32 %v182, %v184
    %vm188 = vc.u32 %v182, %v184
    %v189 = vadd.s32 %v185, 1
    %v190 = vsel %vm188, %v189, %v185
    %v191 = vadd.s32 %v186, %v190
    %v192 = vadd.s32 %v191, 536870912
    %v193 = vshrl.u32 %v192, 30
    %v194 = vshll.u32 %v193, 30
    %v195 = vsub.s32 %v191, %v194
    %vm196 = vcmp.lt.s32.totalorder %v195, 0
    %v197 = vsub.s32 0, %v195
    %v198 = vsel %vm196, %v197, %v195
    %v199 = vclz %v198
    %v200 = vsub.s32 %v199, 2
    %vm201 = vcmp.gt.s32.totalorder 0, %v200
    %v202 = vsel %vm201, 0, %v200
    %v203 = vsub.s32 32, %v202
    %v204 = vshll.u32 %v195, %v202
    %v205 = vshrl.u32 %v187, %v203
    %v206 = vor.u32 %v204, %v205
    %v207 = vsub.s32 4294967266, %v202
    %v208 = vadd.s32 %v207, 127
    %v209 = vshll.u32 %v208, 23
    %v210 = vor.u32 4788187, %v209
    %v211 = vand.u32 2147483647, %v210
    %v213 = vcvt.s32.f32 %v206
    %v214 = vmul.f32 %v213, %v211
    %v215 = vxor.u32 %v214, 2147483648
    %v216 = vsel %vm133, %v215, %v214
    %v217 = vsub.s32 4, %v193
    %v218 = vsel %vm133, %v217, %v193
    %v219 = vsel %vm132, %v26, %v216
    %v220 = vsel %vm132, 0, %v218
    %v221 = vcosq.f32.pop %v219
    %v222 = vsinq.f32.pop %v219
    %vm223 = vweird.f32 %v26
    %v224 = vand.u32 %v220, 3
    %vm225 = vcmp.lt.s32.totalorder %v224, 2
    %vm226 = vcmp.eq.s32.totalorder %v224, 0
    %v227 = vxor.u32 %v222, 2147483648
    %v228 = vsel %vm226, %v221, %v227
    %vm229 = vcmp.eq.s32.totalorder %v224, 2
    %v230 = vxor.u32 %v221, 2147483648
    %v231 = vsel %vm229, %v230, %v222
    %v232 = vsel %vm225, %v228, %v231
    %v233 = vsel %vm223, nan, %v232
    %v234 = vld [vmem:[%s1] sm:$0xff]
    %v235 = vld [vmem:[%s1 + $0x8] sm:$0xff]
    %v236 = vld [vmem:[%s1 + $0x10] sm:$0xff]
    %v237 = vld [vmem:[%s1 + $0x18] sm:$0xff]
    %v238 = vld [vmem:[%s1 + $0x20] sm:$0xff]
    %v239 = vld [vmem:[%s1 + $0x28] sm:$0xff]
    %v240 = vld [vmem:[%s1 + $0x30] sm:$0x3]
    %242 = vset.pattern.permute.xlu0 0
    %243 = vperm.xlu0 %242, %v234
    %v244 = vpop.permute.xlu0 %243
    %247 = vset.pattern.permute.xlu0 0
    %248 = vperm.xlu0 %247, %v235
    %v249 = vpop.permute.xlu0 %248
    %252 = vset.pattern.permute.xlu0 0
    %253 = vperm.xlu0 %252, %v236
    %v254 = vpop.permute.xlu0 %253
    %257 = vset.pattern.permute.xlu0 0
    %258 = vperm.xlu0 %257, %v237
    %v259 = vpop.permute.xlu0 %258
    %262 = vset.pattern.permute.xlu0 0
    %263 = vperm.xlu0 %262, %v238
    %v264 = vpop.permute.xlu0 %263
    %267 = vset.pattern.permute.xlu0 0
    %268 = vperm.xlu0 %267, %v239
    %v269 = vpop.permute.xlu0 %268
    %272 = vset.pattern.permute.xlu0 0
    %273 = vperm.xlu0 %272, %v240
    %v274 = vpop.permute.xlu0 %273
    %v277 = vlaneseq
    %v278 = vshrl.u32 %v277, 7
    %v279 = vsub.s32 0, %v278
    %v280 = vrot.slane %v130, %v279
    %v282 = vmul.f32 %v244, %v280
    %v283 = vmul.f32 %v249, %v280
    %v284 = vmul.f32 %v254, %v280
    %v285 = vmul.f32 %v259, %v280
    %v286 = vmul.f32 %v264, %v280
    %v287 = vmul.f32 %v269, %v280
    %v288 = vmul.f32 %v274, %v280
    %v289 = vld [vmem:[%s2] sm:$0xff]
    %v290 = vld [vmem:[%s2 + $0x8] sm:$0xff]
    %v291 = vld [vmem:[%s2 + $0x10] sm:$0xff]
    %v292 = vld [vmem:[%s2 + $0x18] sm:$0xff]
    %v293 = vld [vmem:[%s2 + $0x20] sm:$0xff]
    %v294 = vld [vmem:[%s2 + $0x28] sm:$0xff]
    %v295 = vld [vmem:[%s2 + $0x30] sm:$0x3]
    %297 = vset.pattern.permute.xlu0 0
    %298 = vperm.xlu0 %297, %v289
    %v299 = vpop.permute.xlu0 %298
    %302 = vset.pattern.permute.xlu0 0
    %303 = vperm.xlu0 %302, %v290
    %v304 = vpop.permute.xlu0 %303
    %307 = vset.pattern.permute.xlu0 0
    %308 = vperm.xlu0 %307, %v291
    %v309 = vpop.permute.xlu0 %308
    %312 = vset.pattern.permute.xlu0 0
    %313 = vperm.xlu0 %312, %v292
    %v314 = vpop.permute.xlu0 %313
    %317 = vset.pattern.permute.xlu0 0
    %318 = vperm.xlu0 %317, %v293
    %v319 = vpop.permute.xlu0 %318
    %322 = vset.pattern.permute.xlu0 0
    %323 = vperm.xlu0 %322, %v294
    %v324 = vpop.permute.xlu0 %323
    %327 = vset.pattern.permute.xlu0 0
    %328 = vperm.xlu0 %327, %v295
    %v329 = vpop.permute.xlu0 %328
    %v332 = vlaneseq
    %v333 = vshrl.u32 %v332, 7
    %v334 = vsub.s32 0, %v333
    %v335 = vrot.slane %v233, %v334
    %v337 = vmul.f32 %v299, %v335
    %v338 = vmul.f32 %v304, %v335
    %v339 = vmul.f32 %v309, %v335
    %v340 = vmul.f32 %v314, %v335
    %v341 = vmul.f32 %v319, %v335
    %v342 = vmul.f32 %v324, %v335
    %v343 = vmul.f32 %v329, %v335
    %v344 = vadd.f32 %v282, %v337
    %v345 = vadd.f32 %v283, %v338
    %v346 = vadd.f32 %v284, %v339
    %v347 = vadd.f32 %v285, %v340
    %v348 = vadd.f32 %v286, %v341
    %v349 = vadd.f32 %v287, %v342
    %v350 = vadd.f32 %v288, %v343
    %v351 = vld [vmem:[%s3] sm:$0xff]
    %v352 = vld [vmem:[%s3 + $0x8] sm:$0xff]
    %v353 = vld [vmem:[%s3 + $0x10] sm:$0xff]
    %v354 = vld [vmem:[%s3 + $0x18] sm:$0xff]
    %v355 = vld [vmem:[%s3 + $0x20] sm:$0xff]
    %v356 = vld [vmem:[%s3 + $0x28] sm:$0xff]
    %v357 = vld [vmem:[%s3 + $0x30] sm:$0x3]
    %359 = vset.pattern.permute.xlu0 0
    %360 = vperm.xlu0 %359, %v351
    %v361 = vpop.permute.xlu0 %360
    %364 = vset.pattern.permute.xlu0 0
    %365 = vperm.xlu0 %364, %v352
    %v366 = vpop.permute.xlu0 %365
    %369 = vset.pattern.permute.xlu0 0
    %370 = vperm.xlu0 %369, %v353
    %v371 = vpop.permute.xlu0 %370
    %374 = vset.pattern.permute.xlu0 0
    %375 = vperm.xlu0 %374, %v354
    %v376 = vpop.permute.xlu0 %375
    %379 = vset.pattern.permute.xlu0 0
    %380 = vperm.xlu0 %379, %v355
    %v381 = vpop.permute.xlu0 %380
    %384 = vset.pattern.permute.xlu0 0
    %385 = vperm.xlu0 %384, %v356
    %v386 = vpop.permute.xlu0 %385
    %389 = vset.pattern.permute.xlu0 0
    %390 = vperm.xlu0 %389, %v357
    %v391 = vpop.permute.xlu0 %390
    %v393 = vadd.f32 %v344, %v361
    %v394 = vadd.f32 %v345, %v366
    %v395 = vadd.f32 %v346, %v371
    %v396 = vadd.f32 %v347, %v376
    %v397 = vadd.f32 %v348, %v381
    %v398 = vadd.f32 %v349, %v386
    %v399 = vadd.f32 %v350, %v391
    %v400 = vmax.f32 %v393, 0.0
    %v401 = vmax.f32 %v394, 0.0
    %v402 = vmax.f32 %v395, 0.0
    %v403 = vmax.f32 %v396, 0.0
    %v404 = vmax.f32 %v397, 0.0
    %v405 = vmax.f32 %v398, 0.0
    %v406 = vmax.f32 %v399, 0.0
    %v407 = vld [vmem:[%s4] sm:$0xff]
    %v408 = vld [vmem:[%s4 + $0x8] sm:$0xff]
    %v409 = vld [vmem:[%s5] sm:$0xff]
    %v410 = vld [vmem:[%s5 + $0x8] sm:$0xff]
    %412 = vset.pattern.permute.xlu0 0
    %413 = vperm.xlu0 %412, %v409
    %v414 = vpop.permute.xlu0 %413
    %417 = vset.pattern.permute.xlu0 0
    %418 = vperm.xlu0 %417, %v410
    %v419 = vpop.permute.xlu0 %418
    %vm421 = vcmask 408576
    %v423 = vsel %vm421, %v407, 0
    %v426 = vsel %vm421, %v408, 0
    %vm428 = vcmask 1041408
    %v430 = vsel %vm428, %v406, 0
    %432 = vmatprep.subr.mxu0 0.0
    %433 = vmatpush1.msra.mxu0 %v400
    %434 = vmatprep.subr.mxu0 0.0
    %435 = vmatpush1.msra.mxu0 %v401
    %436 = vmatprep.subr.mxu0 0.0
    %437 = vmatpush1.msra.mxu0 %v402
    %438 = vmatprep.subr.mxu0 0.0
    %439 = vmatpush1.msra.mxu0 %v403
    %440 = vmatprep.subr.mxu0 0.0
    %441 = vmatpush1.msra.mxu0 %v404
    %442 = vmatprep.subr.mxu0 0.0
    %443 = vmatpush1.msra.mxu0 %v405
    %444 = vmatprep.subr.mxu0 0.0
    %445 = vmatpush1.msra.mxu0 %v430
    %446 = vmatprep.subr.mxu0 0.0
    %447 = vmatpush1.msra.mxu0 0.0
    %448 = vmatprep.subr.mxu0 0.0
    %449 = vmatpush1.msra.mxu0 0.0
    %450 = vmatprep.subr.mxu0 0.0
    %451 = vmatpush1.msra.mxu0 0.0
    %452 = vmatprep.subr.mxu0 0.0
    %453 = vmatpush1.msra.mxu0 0.0
    %454 = vmatprep.subr.mxu0 0.0
    %455 = vmatpush1.msra.mxu0 0.0
    %456 = vmatprep.subr.mxu0 0.0
    %457 = vmatpush1.msra.mxu0 0.0
    %458 = vmatprep.subr.mxu0 0.0
    %459 = vmatpush1.msra.mxu0 0.0
    %460 = vmatprep.subr.mxu0 0.0
    %461 = vmatpush1.msra.mxu0 0.0
    %462 = vmatprep.subr.mxu0 0.0
    %463 = vmatpush1.msra.mxu0 0.0
    %464 = vmatprep.subr.mxu0 0.0
    %465 = vmatpush1.msra.mxu0 0.0
    %466 = vmatprep.subr.mxu0 0.0
    %467 = vmatpush1.msra.mxu0 0.0
    %468 = vmatprep.subr.mxu0 0.0
    %469 = vmatpush1.msra.mxu0 0.0
    %470 = vmatprep.subr.mxu0 0.0
    %471 = vmatpush1.msra.mxu0 0.0
    %472 = vmatprep.subr.mxu0 0.0
    %473 = vmatpush1.msra.mxu0 0.0
    %474 = vmatprep.subr.mxu0 0.0
    %475 = vmatpush1.msra.mxu0 0.0
    %476 = vmatprep.subr.mxu0 0.0
    %477 = vmatpush1.msra.mxu0 0.0
    %478 = vmatprep.subr.mxu0 0.0
    %479 = vmatpush1.msra.mxu0 0.0
    %480 = vmatprep.subr.mxu0 0.0
    %481 = vmatpush1.msra.mxu0 0.0
    %482 = vmatprep.subr.mxu0 0.0
    %483 = vmatpush1.msra.mxu0 0.0
    %484 = vmatprep.subr.mxu0 0.0
    %485 = vmatpush1.msra.mxu0 0.0
    %486 = vmatprep.subr.mxu0 0.0
    %487 = vmatpush1.msra.mxu0 0.0
    %488 = vmatprep.subr.mxu0 0.0
    %489 = vmatpush1.msra.mxu0 0.0
    %490 = vmatprep.subr.mxu0 0.0
    %491 = vmatpush1.msra.mxu0 0.0
    %492 = vmatprep.subr.mxu0 0.0
    %493 = vmatpush1.msra.mxu0 0.0
    %494 = vmatprep.subr.mxu0 0.0
    %495 = vmatpush1.msra.mxu0 0.0
    %496 = vmatprep.mubr.f32.mxu0 0.0
    %497 = vmatmul.mubr.f32.gmra.mrb[0].mxu0 %v423
    %v498 = vpop.f32.mrb[0].mxu0
    %v499 = vadd.f32 %v414, %v498
    %v500 = vpop.f32.mrb[0].mxu0
    %501 = vmatprep.mubr.f32.mxu0 0.0
    %502 = vmatmul.mubr.f32.gmra.mrb[0].mxu0 %v426
    %v503 = vpop.f32.mrb[0].mxu0
    %v504 = vadd.f32 %v419, %v503
    %v505 = vpop.f32.mrb[0].mxu0
    %506 = vdwg.mxu0
    %507 = vst [vmem:[#allocation2] sm:$0xff] %v499
    %508 = vst [vmem:[#allocation2 + $0x8] sm:$0xff] %v504
    // Predicated region
    $region26: #{tpu_custom_call.1} parent=1 // pred_check
      _
    $region27: #{tpu_custom_call.1} parent=1 // pred_check_branch
      %510 = sbr.rel (0) target = $region29
    $region28: #{tpu_custom_call.1} parent=1 // pred_region
      %s512 = ssub.s32 256, 256
      %513 = vsyncadd [#allocation3], %s512
      %s514 = sshll.u32 [#allocation2], 4
      %s515 = int_to_ptr.vmem [resolvable:$true] %s514
      %520 = dma.vmem_to_hbm [thread:$0]  %s515, 256, %s6, [#allocation3], 128, 128, 8
    $region29: #{tpu_custom_call.1} parent=1 // pred_fallthru
      _
    // Predicated region
    $region30: #{tpu_custom_call.1} parent=1 // pred_check
      _
    $region31: #{tpu_custom_call.1} parent=1 // pred_check_branch
      %522 = sbr.rel (0) target = $region33
    $region32: #{tpu_custom_call.1} parent=1 // pred_region
      %523 = dma.done [#allocation3], 256
    $region33: #{tpu_custom_call.1} parent=1 // pred_fallthru
      _
    %524 = vsyncpa [#allocation3], 1

</llo_original>
